<compile_context>
chip_gen: v5e
topology: v5e:2x2
jax: 0.10.0
libtpu: 0.0.40
codegen_flags: <defaults>
</compile_context>

<pallas_src>
import math

import jax
import jax.numpy as jnp
from jax.experimental import pallas as pl
from jax.experimental.pallas import tpu as pltpu


_NEG_SLOPE = 0.2
_BN_EPS = 1e-5
_LANE = 128


def _round_up(n, m):
    return ((n + m - 1) // m) * m


# ----------------------------------------------------------------------------
# Fully-fused decoder kernel.
#
# refs layout: (x, w_0 .. w_{L-1}, shift_0 .. shift_{L-1}, out)
#   hidden layer i:  h = leaky_relu(h @ w_i + shift_i)
#   final layer:     out = h @ w_{L-1} + shift_{L-1}
# All matmuls run on the MXU with f32 accumulation; intermediates never leave
# VMEM/vregs. At these sizes (weights < 128 KB) the kernel is dispatch-bound,
# so one launch for the whole network is the dominant win.
# ----------------------------------------------------------------------------
def _make_decoder_kernel(num_layers, negative_slope=_NEG_SLOPE):
    def kernel(*refs):
        x_ref = refs[0]
        w_refs = refs[1:1 + num_layers]
        s_refs = refs[1 + num_layers:1 + 2 * num_layers]
        o_ref = refs[1 + 2 * num_layers]

        h = x_ref[...]
        for i in range(num_layers):
            h = jnp.dot(h, w_refs[i][...],
                        preferred_element_type=jnp.float32) + s_refs[i][...]
            if i < num_layers - 1:                       # hidden layers only
                h = jnp.where(h >= 0.0, h, negative_slope * h)  # LeakyReLU
        o_ref[...] = h.astype(o_ref.dtype)

    return kernel


def decoder_forward(folded, x):
    """Single fused pallas_call over the whole decoder stack."""
    ws, shifts = folded["ws"], folded["shifts"]
    num_layers = len(ws)
    B = x.shape[0]
    dout_padded = ws[-1].shape[1]

    vmem = pl.BlockSpec(memory_space=pltpu.MemorySpace.VMEM)
    out_padded = pl.pallas_call(
        _make_decoder_kernel(num_layers),
        out_shape=jax.ShapeDtypeStruct((B, dout_padded), x.dtype),
        in_specs=[vmem] * (1 + 2 * num_layers),
        out_specs=vmem,
        # No grid: single invocation, everything VMEM-resident. (If the batch
        # ever grows to production sizes, add a "parallel" batch grid axis so
        # v7x's second TensorCore is used; at B=8 that is pure overhead.)
    )(x, *ws, *shifts)
    return out_padded[:, :folded["out_dim"]]


# ----------------------------------------------------------------------------
# Parameter construction (deterministic, mirrors nn.Linear / BatchNorm1d init)
# ----------------------------------------------------------------------------
def _init_linear(key, in_dim, out_dim, dtype=jnp.float32):
    # PyTorch default: U(-1/sqrt(fan_in), 1/sqrt(fan_in)) for weight and bias.
    kw, kb = jax.random.split(key)
    bound = 1.0 / math.sqrt(in_dim)
    w = jax.random.uniform(kw, (in_dim, out_dim), dtype, -bound, bound)
    b = jax.random.uniform(kb, (out_dim,), dtype, -bound, bound)
    return w, b


def build_decoder_params(key, input_dim, hidden_dim, latent_dim):
    """Raw (PyTorch-style) params replicating Decoder.__init__ topology."""
    dims = list(hidden_dim) + [latent_dim]
    layer_dims = []
    dim1 = dims[-1]
    for dim2 in reversed(dims[:-1]):
        layer_dims.append((dim1, dim2, True))    # LinearBlock (BN + LeakyReLU)
        dim1 = dim2
    layer_dims.append((dim1, input_dim, False))  # final plain Linear

    params = []
    for i, (din, dout, has_bn_act) in enumerate(layer_dims):
        w, b = _init_linear(jax.random.fold_in(key, i), din, dout)
        layer = dict(w=w, b=b, has_bn_act=has_bn_act)
        if has_bn_act:
            layer.update(
                gamma=jnp.ones((dout,), jnp.float32),
                beta=jnp.zeros((dout,), jnp.float32),
                run_mean=jnp.zeros((dout,), jnp.float32),
                run_var=jnp.ones((dout,), jnp.float32),
            )
        params.append(layer)
    return params


def fold_decoder_params(raw_params):
    """Host-side fold of bias + eval-mode BatchNorm into (W', shift').

    The final layer's output dim is zero-padded to a multiple of 128 so the
    kernel's only HBM store is lane-dense; the wrapper slices the pad off.
    """
    num_layers = len(raw_params)
    ws, shifts = [], []
    for i, p in enumerate(raw_params):
        w, b = p["w"], p["b"]
        if p["has_bn_act"]:
            scale = p["gamma"] / jnp.sqrt(p["run_var"] + _BN_EPS)
            shift = p["beta"] - p["run_mean"] * scale
            w = w * scale[None, :]
            shift = b * scale + shift
        else:
            shift = b
        if i == num_layers - 1:
            dout = w.shape[1]
            dpad = _round_up(dout, _LANE)
            if dpad != dout:
                w = jnp.pad(w, ((0, 0), (0, dpad - dout)))
                shift = jnp.pad(shift, (0, dpad - dout))
        ws.append(w)
        shifts.append(shift.reshape(1, -1))
    return dict(ws=ws, shifts=shifts, out_dim=raw_params[-1]["w"].shape[1])


# Pure-JAX reference with the original (unfolded) module semantics.
def decoder_forward_ref(raw_params, x):
    h = x
    for p in raw_params:
        y = h @ p["w"] + p["b"]
        if p["has_bn_act"]:
            scale = p["gamma"] / jnp.sqrt(p["run_var"] + _BN_EPS)
            y = (y - p["run_mean"]) * scale + p["beta"]
            y = jnp.where(y >= 0.0, y, _NEG_SLOPE * y)   # LeakyReLU(0.2)
        h = y                                            # Dropout = identity
    return h


if __name__ == "__main__":
    # Decoder(input_dim=160, hidden_dim=[64, 128], latent_dim=32)
    # Layer stack (mirroring the PyTorch __init__):
    #   LinearBlock(32 -> 128) -> LinearBlock(128 -> 64) -> Linear(64 -> 160)
    input_dim = 160
    hidden_dim = [64, 128]
    latent_dim = 32
    batch = 8

    key = jax.random.PRNGKey(0)
    kx, kp = jax.random.split(key)
    x = jax.random.normal(kx, (batch, latent_dim), jnp.float32)

    raw_params = build_decoder_params(kp, input_dim, hidden_dim, latent_dim)
    folded = fold_decoder_params(raw_params)

    out = decoder_forward(folded, x)
    out = jax.block_until_ready(out)

    ref = decoder_forward_ref(raw_params, x)
    assert out.shape == (batch, input_dim), out.shape
    assert jnp.allclose(out, ref, atol=1e-4, rtol=1e-4), "mismatch vs reference"

    print("KERNEL_OK")
</pallas_src>

<mosaic_0001>
module attributes {stable_mosaic.version = 11 : i64} {
  func.func @kernel(%arg0: memref<8x32xf32, #tpu.memory_space<vmem>>, %arg1: memref<32x128xf32, #tpu.memory_space<vmem>>, %arg2: memref<128x64xf32, #tpu.memory_space<vmem>>, %arg3: memref<64x256xf32, #tpu.memory_space<vmem>>, %arg4: memref<1x128xf32, #tpu.memory_space<vmem>>, %arg5: memref<1x64xf32, #tpu.memory_space<vmem>>, %arg6: memref<1x256xf32, #tpu.memory_space<vmem>>, %arg7: memref<8x256xf32, #tpu.memory_space<vmem>>) attributes {dimension_semantics = [], scalar_prefetch = 0 : i64, scratch_operands = 0 : i64, tpu.core_type = #tpu.core_type<tc>} {
    %c0 = arith.constant 0 : index
    %c0_0 = arith.constant 0 : index
    %0 = vector.load %arg0[%c0, %c0_0] : memref<8x32xf32, #tpu.memory_space<vmem>>, vector<8x32xf32>
    %c0_1 = arith.constant 0 : index
    %c0_2 = arith.constant 0 : index
    %1 = vector.load %arg1[%c0_1, %c0_2] : memref<32x128xf32, #tpu.memory_space<vmem>>, vector<32x128xf32>
    %cst = arith.constant dense<0.000000e+00> : vector<8x128xf32>
    %2 = tpu.matmul %0, %1, %cst {dimension_numbers = #tpu.dot_dimension_numbers<[1], [0], [0], [1], [0, 0, 1, 1], [], []>} : vector<8x32xf32>, vector<32x128xf32>, vector<8x128xf32> -> vector<8x128xf32>
    %c0_3 = arith.constant 0 : index
    %c0_4 = arith.constant 0 : index
    %3 = vector.load %arg4[%c0_3, %c0_4] : memref<1x128xf32, #tpu.memory_space<vmem>>, vector<1x128xf32>
    %4 = vector.broadcast %3 : vector<1x128xf32> to vector<8x128xf32>
    %5 = arith.addf %2, %4 : vector<8x128xf32>
    %cst_5 = arith.constant 0.000000e+00 : f32
    %6 = vector.broadcast %cst_5 : f32 to vector<8x128xf32>
    %7 = arith.cmpf oge, %5, %6 : vector<8x128xf32>
    %cst_6 = arith.constant 2.000000e-01 : f32
    %8 = vector.broadcast %cst_6 : f32 to vector<8x128xf32>
    %9 = arith.mulf %8, %5 : vector<8x128xf32>
    %10 = arith.select %7, %5, %9 : vector<8x128xi1>, vector<8x128xf32>
    %c0_7 = arith.constant 0 : index
    %c0_8 = arith.constant 0 : index
    %11 = vector.load %arg2[%c0_7, %c0_8] : memref<128x64xf32, #tpu.memory_space<vmem>>, vector<128x64xf32>
    %cst_9 = arith.constant dense<0.000000e+00> : vector<8x64xf32>
    %12 = tpu.matmul %10, %11, %cst_9 {dimension_numbers = #tpu.dot_dimension_numbers<[1], [0], [0], [1], [0, 0, 1, 1], [], []>} : vector<8x128xf32>, vector<128x64xf32>, vector<8x64xf32> -> vector<8x64xf32>
    %c0_10 = arith.constant 0 : index
    %c0_11 = arith.constant 0 : index
    %13 = vector.load %arg5[%c0_10, %c0_11] : memref<1x64xf32, #tpu.memory_space<vmem>>, vector<1x64xf32>
    %14 = vector.broadcast %13 : vector<1x64xf32> to vector<8x64xf32>
    %15 = arith.addf %12, %14 : vector<8x64xf32>
    %cst_12 = arith.constant 0.000000e+00 : f32
    %16 = vector.broadcast %cst_12 : f32 to vector<8x64xf32>
    %17 = arith.cmpf oge, %15, %16 : vector<8x64xf32>
    %cst_13 = arith.constant 2.000000e-01 : f32
    %18 = vector.broadcast %cst_13 : f32 to vector<8x64xf32>
    %19 = arith.mulf %18, %15 : vector<8x64xf32>
    %20 = arith.select %17, %15, %19 : vector<8x64xi1>, vector<8x64xf32>
    %c0_14 = arith.constant 0 : index
    %c0_15 = arith.constant 0 : index
    %21 = vector.load %arg3[%c0_14, %c0_15] : memref<64x256xf32, #tpu.memory_space<vmem>>, vector<64x256xf32>
    %cst_16 = arith.constant dense<0.000000e+00> : vector<8x256xf32>
    %22 = tpu.matmul %20, %21, %cst_16 {dimension_numbers = #tpu.dot_dimension_numbers<[1], [0], [0], [1], [0, 0, 1, 1], [], []>} : vector<8x64xf32>, vector<64x256xf32>, vector<8x256xf32> -> vector<8x256xf32>
    %c0_17 = arith.constant 0 : index
    %c0_18 = arith.constant 0 : index
    %23 = vector.load %arg6[%c0_17, %c0_18] : memref<1x256xf32, #tpu.memory_space<vmem>>, vector<1x256xf32>
    %24 = vector.broadcast %23 : vector<1x256xf32> to vector<8x256xf32>
    %25 = arith.addf %22, %24 : vector<8x256xf32>
    %c0_19 = arith.constant 0 : index
    %c0_20 = arith.constant 0 : index
    %26 = vector.load %arg7[%c0_19, %c0_20] : memref<8x256xf32, #tpu.memory_space<vmem>>, vector<8x256xf32>
    tpu.vector_store %arg7[%c0_19, %c0_20], %25 {strides = array<i32>} : memref<8x256xf32, #tpu.memory_space<vmem>>, vector<8x256xf32>,
    return
  }
}

</mosaic_0001>

<llo_original>
// kernel: tpu_custom_call.1
$region0: #{tpu_custom_call.1}
  #allocation0 [shape = 'u32[]', space=smem, size = 0x4, offset = 0x4, fixed_abs, tag = 'smem constant byte address 0x4 - core index']
  #allocation1 [shape = 'u32[72,128]{1,0:T(1,128)}', space=vmem, size = 0x9000, scoped, tag = 'internal scratch']
  %s0 = inlined_call_operand.vmem [shape: f32[8,32], index: 0, kind: input, shape index: {}]
  %s1 = inlined_call_operand.vmem [shape: f32[32,128], index: 1, kind: input, shape index: {}]
  %s2 = inlined_call_operand.vmem [shape: f32[128,64], index: 2, kind: input, shape index: {}]
  %s3 = inlined_call_operand.vmem [shape: f32[64,256], index: 3, kind: input, shape index: {}]
  %s4 = inlined_call_operand.vmem [shape: f32[1,128], index: 4, kind: input, shape index: {}]
  %s5 = inlined_call_operand.vmem [shape: f32[1,64], index: 5, kind: input, shape index: {}]
  %s6 = inlined_call_operand.vmem [shape: f32[1,256], index: 6, kind: input, shape index: {}]
  %s7 = inlined_call_operand.hbm [shape: f32[8,256], index: 7, kind: output, shape index: {}]
  %s8 = sld [smem:[#allocation0]]
  $region38: #{tpu_custom_call.1} parent=0
    _
  %s10 = ssub.s32 1, %s8
  %s11 = scalar_select 0, %s10, %s8
  $region1: #{tpu_custom_call.1} parent=0
    #allocation2 [shape = 'u8[8192]{0}', space=vmem, size = 0x2000, scoped, tag = 'output window, operand 0, single buffered']
    #allocation3 [shape = 's32[1]{0}', space=sflag, size = 0x4, scoped, tag = 'scoped memory for tpu_custom_call.1']
    %12 = vsyncpa [#allocation3], 0
    // Predicated region
    $region2: #{tpu_custom_call.1} parent=1 // pred_check
      _
    $region3: #{tpu_custom_call.1} parent=1 // pred_check_branch
      %14 = sbr.rel (0) target = $region5
    $region4: #{tpu_custom_call.1} parent=1 // pred_region
      _
    $region5: #{tpu_custom_call.1} parent=1 // pred_fallthru
      _
    // Predicated region
    $region6: #{tpu_custom_call.1} parent=1 // pred_check
      _
    $region7: #{tpu_custom_call.1} parent=1 // pred_check_branch
      %16 = sbr.rel (0) target = $region9
    $region8: #{tpu_custom_call.1} parent=1 // pred_region
      _
    $region9: #{tpu_custom_call.1} parent=1 // pred_fallthru
      _
    // Predicated region
    $region10: #{tpu_custom_call.1} parent=1 // pred_check
      _
    $region11: #{tpu_custom_call.1} parent=1 // pred_check_branch
      %18 = sbr.rel (0) target = $region13
    $region12: #{tpu_custom_call.1} parent=1 // pred_region
      _
    $region13: #{tpu_custom_call.1} parent=1 // pred_fallthru
      _
    // Predicated region
    $region14: #{tpu_custom_call.1} parent=1 // pred_check
      _
    $region15: #{tpu_custom_call.1} parent=1 // pred_check_branch
      %20 = sbr.rel (0) target = $region17
    $region16: #{tpu_custom_call.1} parent=1 // pred_region
      _
    $region17: #{tpu_custom_call.1} parent=1 // pred_fallthru
      _
    // Predicated region
    $region18: #{tpu_custom_call.1} parent=1 // pred_check
      _
    $region19: #{tpu_custom_call.1} parent=1 // pred_check_branch
      %22 = sbr.rel (0) target = $region21
    $region20: #{tpu_custom_call.1} parent=1 // pred_region
      _
    $region21: #{tpu_custom_call.1} parent=1 // pred_fallthru
      _
    // Predicated region
    $region22: #{tpu_custom_call.1} parent=1 // pred_check
      _
    $region23: #{tpu_custom_call.1} parent=1 // pred_check_branch
      %24 = sbr.rel (0) target = $region25
    $region24: #{tpu_custom_call.1} parent=1 // pred_region
      _
    $region25: #{tpu_custom_call.1} parent=1 // pred_fallthru
      _
    // Predicated region
    $region26: #{tpu_custom_call.1} parent=1 // pred_check
      _
    $region27: #{tpu_custom_call.1} parent=1 // pred_check_branch
      %26 = sbr.rel (0) target = $region29
    $region28: #{tpu_custom_call.1} parent=1 // pred_region
      _
    $region29: #{tpu_custom_call.1} parent=1 // pred_fallthru
      _
    %v27 = vld [vmem:[%s0] sm:$0xff]
    %v28 = vld [vmem:[%s1] sm:$0xff]
    %v29 = vld [vmem:[%s1 + $0x8] sm:$0xff]
    %v30 = vld [vmem:[%s1 + $0x10] sm:$0xff]
    %v31 = vld [vmem:[%s1 + $0x18] sm:$0xff]
    %v32 = vld [vmem:[%s4] sm:$0x1]
    %v34 = vperm.slane %v32, 0
    %vm36 = vcmask 261120
    %v38 = vsel %vm36, %v27, 0
    %40 = vmatpush.msra.mxu0 0.0
    %41 = vmatpush.msra.mxu0 0.0
    %42 = vmatpush.msra.mxu0 0.0
    %43 = vmatpush.msra.mxu0 0.0
    %44 = vmatpush.msra.mxu0 0.0
    %45 = vmatpush.msra.mxu0 0.0
    %46 = vmatpush.msra.mxu0 0.0
    %47 = vmatpush.msra.mxu0 0.0
    %48 = vmatpush.msra.mxu0 0.0
    %49 = vmatpush.msra.mxu0 0.0
    %50 = vmatpush.msra.mxu0 0.0
    %51 = vmatpush.msra.mxu0 0.0
    %52 = vmatpush.msra.mxu0 %v31
    %53 = vmatpush.msra.mxu0 %v30
    %54 = vmatpush.msra.mxu0 %v29
    %55 = vmatpush.msra.mxu0 %v28
    %56 = vmatmul.f32.gmra.mxu0 %v38
    %v57 = vpop.f32.mrf.mxu0
    %v58 = vadd.f32 %v34, %v57
    %59 = vdwg.mxu0
    %vm60 = vcmp.ge.f32.partialorder %v58, 0.0
    %v61 = vmul.f32 %v58, 0.2
    %v62 = vsel %vm60, %v58, %v61
    %v63 = vld [vmem:[%s2] sm:$0xff]
    %v64 = vld [vmem:[%s2 + $0x8] sm:$0xff]
    %v65 = vld [vmem:[%s2 + $0x10] sm:$0xff]
    %v66 = vld [vmem:[%s2 + $0x18] sm:$0xff]
    %v67 = vld [vmem:[%s2 + $0x20] sm:$0xff]
    %v68 = vld [vmem:[%s2 + $0x28] sm:$0xff]
    %v69 = vld [vmem:[%s2 + $0x30] sm:$0xff]
    %v70 = vld [vmem:[%s2 + $0x38] sm:$0xff]
    %v71 = vld [vmem:[%s2 + $0x40] sm:$0xff]
    %v72 = vld [vmem:[%s2 + $0x48] sm:$0xff]
    %v73 = vld [vmem:[%s2 + $0x50] sm:$0xff]
    %v74 = vld [vmem:[%s2 + $0x58] sm:$0xff]
    %v75 = vld [vmem:[%s2 + $0x60] sm:$0xff]
    %v76 = vld [vmem:[%s2 + $0x68] sm:$0xff]
    %v77 = vld [vmem:[%s2 + $0x70] sm:$0xff]
    %v78 = vld [vmem:[%s2 + $0x78] sm:$0xff]
    %v79 = vld [vmem:[%s5] sm:$0x1]
    %v81 = vperm.slane %v79, 0
    %83 = vmatpush.msra.mxu0 %v78
    %84 = vmatpush.msra.mxu0 %v77
    %85 = vmatpush.msra.mxu0 %v76
    %86 = vmatpush.msra.mxu0 %v75
    %87 = vmatpush.msra.mxu0 %v74
    %88 = vmatpush.msra.mxu0 %v73
    %89 = vmatpush.msra.mxu0 %v72
    %90 = vmatpush.msra.mxu0 %v71
    %91 = vmatpush.msra.mxu0 %v70
    %92 = vmatpush.msra.mxu0 %v69
    %93 = vmatpush.msra.mxu0 %v68
    %94 = vmatpush.msra.mxu0 %v67
    %95 = vmatpush.msra.mxu0 %v66
    %96 = vmatpush.msra.mxu0 %v65
    %97 = vmatpush.msra.mxu0 %v64
    %98 = vmatpush.msra.mxu0 %v63
    %99 = vmatmul.f32.gmra.mxu0 %v62
    %v100 = vpop.f32.mrf.mxu0
    %v101 = vadd.f32 %v81, %v100
    %102 = vdwg.mxu0
    %vm103 = vcmp.ge.f32.partialorder %v101, 0.0
    %v104 = vmul.f32 %v101, 0.2
    %v105 = vsel %vm103, %v101, %v104
    %v106 = vld [vmem:[%s3] sm:$0xff]
    %v107 = vld [vmem:[%s3 + $0x8] sm:$0xff]
    %v108 = vld [vmem:[%s3 + $0x10] sm:$0xff]
    %v109 = vld [vmem:[%s3 + $0x18] sm:$0xff]
    %v110 = vld [vmem:[%s3 + $0x20] sm:$0xff]
    %v111 = vld [vmem:[%s3 + $0x28] sm:$0xff]
    %v112 = vld [vmem:[%s3 + $0x30] sm:$0xff]
    %v113 = vld [vmem:[%s3 + $0x38] sm:$0xff]
    %v114 = vld [vmem:[%s3 + $0x40] sm:$0xff]
    %v115 = vld [vmem:[%s3 + $0x48] sm:$0xff]
    %v116 = vld [vmem:[%s3 + $0x50] sm:$0xff]
    %v117 = vld [vmem:[%s3 + $0x58] sm:$0xff]
    %v118 = vld [vmem:[%s3 + $0x60] sm:$0xff]
    %v119 = vld [vmem:[%s3 + $0x68] sm:$0xff]
    %v120 = vld [vmem:[%s3 + $0x70] sm:$0xff]
    %v121 = vld [vmem:[%s3 + $0x78] sm:$0xff]
    %v122 = vld [vmem:[%s6] sm:$0x3]
    %v124 = vperm.slane %v122, 0
    %v125 = vperm.slane %v122, 1
    %vm128 = vcmask 523264
    %v130 = vsel %vm128, %v105, 0
    %132 = vmatpush.msra.mxu0 0.0
    %133 = vmatpush.msra.mxu0 0.0
    %134 = vmatpush.msra.mxu0 0.0
    %135 = vmatpush.msra.mxu0 0.0
    %136 = vmatpush.msra.mxu0 0.0
    %137 = vmatpush.msra.mxu0 0.0
    %138 = vmatpush.msra.mxu0 0.0
    %139 = vmatpush.msra.mxu0 0.0
    %140 = vmatpush.msra.mxu0 %v120
    %141 = vmatpush.msra.mxu0 %v118
    %142 = vmatpush.msra.mxu0 %v116
    %143 = vmatpush.msra.mxu0 %v114
    %144 = vmatpush.msra.mxu0 %v112
    %145 = vmatpush.msra.mxu0 %v110
    %146 = vmatpush.msra.mxu0 %v108
    %147 = vmatpush.msra.mxu0 %v106
    %148 = vmatmul.f32.gmra.mxu0 %v130
    %v149 = vpop.f32.mrf.mxu0
    %v150 = vadd.f32 %v124, %v149
    %151 = vdwg.mxu0
    %152 = vmatpush.msra.mxu0 0.0
    %153 = vmatpush.msra.mxu0 0.0
    %154 = vmatpush.msra.mxu0 0.0
    %155 = vmatpush.msra.mxu0 0.0
    %156 = vmatpush.msra.mxu0 0.0
    %157 = vmatpush.msra.mxu0 0.0
    %158 = vmatpush.msra.mxu0 0.0
    %159 = vmatpush.msra.mxu0 0.0
    %160 = vmatpush.msra.mxu0 %v121
    %161 = vmatpush.msra.mxu0 %v119
    %162 = vmatpush.msra.mxu0 %v117
    %163 = vmatpush.msra.mxu0 %v115
    %164 = vmatpush.msra.mxu0 %v113
    %165 = vmatpush.msra.mxu0 %v111
    %166 = vmatpush.msra.mxu0 %v109
    %167 = vmatpush.msra.mxu0 %v107
    %168 = vmatmul.f32.gmra.mxu0 %v130
    %v169 = vpop.f32.mrf.mxu0
    %v170 = vadd.f32 %v125, %v169
    %171 = vdwg.mxu0
    %172 = vst [vmem:[#allocation2] sm:$0xff] %v150
    %173 = vst [vmem:[#allocation2 + $0x8] sm:$0xff] %v170
    // Predicated region
    $region30: #{tpu_custom_call.1} parent=1 // pred_check
      _
    $region31: #{tpu_custom_call.1} parent=1 // pred_check_branch
      %175 = sbr.rel (0) target = $region33
    $region32: #{tpu_custom_call.1} parent=1 // pred_region
      %177 = vsyncadd [#allocation3], 0
      %s179 = sshll.u32 [#allocation2], 4
      %s180 = int_to_ptr.vmem [resolvable:$true] %s179
      %s181 = sshll.u32 %s7, 4
      %s182 = int_to_ptr.hbm [resolvable:$true] %s181
      %184 = dma.vmem_to_hbm [thread:$0]  %s180, 256, %s182, [#allocation3]
    $region33: #{tpu_custom_call.1} parent=1 // pred_fallthru
      _
    // Predicated region
    $region34: #{tpu_custom_call.1} parent=1 // pred_check
      _
    $region35: #{tpu_custom_call.1} parent=1 // pred_check_branch
      %186 = sbr.rel (0) target = $region37
    $region36: #{tpu_custom_call.1} parent=1 // pred_region
      %188 = dma.done [#allocation3], 256
    $region37: #{tpu_custom_call.1} parent=1 // pred_fallthru
      _
    %189 = vsyncpa [#allocation3], 1

</llo_original>
